<compile_context>
chip_gen: v7x
topology: tpu7x:2x2x1
jax: 0.10.0
libtpu: 0.0.40
codegen_flags: <defaults>
</compile_context>

<pallas_src>
import math

import jax
import jax.numpy as jnp
from jax.experimental import pallas as pl
from jax.experimental.pallas import tpu as pltpu


def _lstm_cell_kernel(xzh_ref, c_ref, w_ref, b_ref, out_ref):
    """One LSTMCell step for one batch tile.

    xzh_ref : (bb, 3L) bf16   [x_enc | z_enc | h] pre-stacked along lanes
    c_ref   : (bb,  L) f32
    w_ref   : (3L, 4L) bf16   [W_ih^T ; W_hh^T] pre-stacked along K
    b_ref   : (1,  4L) f32    b_ih + b_hh (pre-summed)
    out_ref : (bb, 2L) f32    [h_next | c_next] lane-dense output slab
    Gate order along the 4L axis matches torch.nn.LSTMCell: [i, f, g, o].
    """
    L = c_ref.shape[-1]

    # Single fused MXU matmul, bf16 inputs, f32 accumulation.           (bb, 4L)
    gates = jnp.dot(xzh_ref[...], w_ref[...],
                    preferred_element_type=jnp.float32) + b_ref[...]

    # Full-vreg transcendentals (2 EUP pushes over all 4L lanes), then select the
    # tanh lanes (g gate, lanes [2L, 3L)) with a lane mask.  Slice only afterwards.
    sig = jax.nn.sigmoid(gates)
    th = jnp.tanh(gates)
    lane = jax.lax.broadcasted_iota(jnp.int32, gates.shape, 1)
    act = jnp.where((lane >= 2 * L) & (lane < 3 * L), th, sig)

    i_g = act[:, 0 * L:1 * L]
    f_g = act[:, 1 * L:2 * L]
    g_g = act[:, 2 * L:3 * L]
    o_g = act[:, 3 * L:4 * L]

    c = c_ref[...]
    c_next = f_g * c + i_g * g_g
    h_next = o_g * jnp.tanh(c_next)

    # Two static-slice stores into the single lane-dense output tile.
    out_ref[:, :L] = h_next.astype(out_ref.dtype)
    out_ref[:, L:] = c_next.astype(out_ref.dtype)


def pack_lstm_params(w_ih, w_hh, b_ih, b_hh):
    """Fold torch-layout LSTMCell params into the kernel layout (done once).

    w_ih: (4L, 2L), w_hh: (4L, L), b_ih/b_hh: (4L,)  ->  ((3L, 4L) bf16, (1, 4L) f32)
    """
    four_l = w_ih.shape[0]
    w_packed = jnp.concatenate([w_ih.T, w_hh.T], axis=0).astype(jnp.bfloat16)
    bias = (b_ih + b_hh).astype(jnp.float32).reshape(1, four_l)
    return w_packed, bias


def lstm_state_forward(x_enc, z_enc, h, c, w_packed, bias):
    """Pallas-backed forward of LSTMState. Returns (h_next, c_next)."""
    B, L = h.shape
    assert x_enc.shape == (B, L) and z_enc.shape == (B, L) and c.shape == (B, L)
    assert w_packed.shape == (3 * L, 4 * L)
    assert bias.shape == (1, 4 * L)

    # Pre-stack activations along lanes and pre-cast matmul inputs to bf16
    # (halves activation/weight DMA bytes; MXU is natively bf16).
    xzh = jnp.concatenate([x_enc, z_enc, h], axis=-1).astype(jnp.bfloat16)  # (B, 3L)
    c = c.astype(jnp.float32)

    # Batch tiling: one grid step per batch tile ("parallel" -> megacore shard).
    bb = B if B <= 256 else 256
    assert B % bb == 0, "batch must be divisible by the batch tile"
    grid = (B // bb,)

    cost = pl.CostEstimate(
        flops=2 * B * (3 * L) * (4 * L) + 10 * B * L,
        transcendentals=2 * B * 4 * L + B * L,
        bytes_accessed=(B * 3 * L * 2 + B * L * 4 + 3 * L * 4 * L * 2
                        + 4 * L * 4 + B * 2 * L * 4),
    )

    out = pl.pallas_call(
        _lstm_cell_kernel,
        out_shape=jax.ShapeDtypeStruct((B, 2 * L), jnp.float32),
        grid_spec=pltpu.PrefetchScalarGridSpec(
            num_scalar_prefetch=0,
            grid=grid,
            in_specs=[
                pl.BlockSpec((bb, 3 * L), lambda i: (i, 0)),      # xzh (batch-tiled)
                pl.BlockSpec((bb, L), lambda i: (i, 0)),          # c   (batch-tiled)
                pl.BlockSpec((3 * L, 4 * L), lambda i: (0, 0)),   # W   (VMEM-resident)
                pl.BlockSpec((1, 4 * L), lambda i: (0, 0)),       # bias(VMEM-resident)
            ],
            out_specs=pl.BlockSpec((bb, 2 * L), lambda i: (i, 0)),
        ),
        compiler_params=pltpu.CompilerParams(
            dimension_semantics=("parallel",),
        ),
        cost_estimate=cost,
    )(xzh, c, w_packed, bias)

    h_next = out[:, :L]
    c_next = out[:, L:]
    return h_next, c_next


def _reference(x_enc, z_enc, h, c, w_packed, bias, cast_bf16):
    """Pure-JAX reference matching torch.nn.LSTMCell semantics."""
    L = h.shape[-1]
    xzh = jnp.concatenate([x_enc, z_enc, h], axis=-1)
    w = w_packed.astype(jnp.float32)
    if cast_bf16:  # mirror the kernel's bf16 matmul operands
        xzh = xzh.astype(jnp.bfloat16)
        w = w.astype(jnp.bfloat16)
    gates = jnp.dot(xzh, w, preferred_element_type=jnp.float32) + bias
    i_g = jax.nn.sigmoid(gates[:, 0 * L:1 * L])
    f_g = jax.nn.sigmoid(gates[:, 1 * L:2 * L])
    g_g = jnp.tanh(gates[:, 2 * L:3 * L])
    o_g = jax.nn.sigmoid(gates[:, 3 * L:4 * L])
    c_next = f_g * c + i_g * g_g
    h_next = o_g * jnp.tanh(c_next)
    return h_next, c_next


if __name__ == "__main__":
    latent_dim = 32   # hidden size L; LSTMCell input size = 2*L = 64
    batch = 8

    key = jax.random.PRNGKey(0)
    k_x, k_z, k_h, k_c, k_wih, k_whh, k_bih, k_bhh = jax.random.split(key, 8)

    x_enc = jax.random.normal(k_x, (batch, latent_dim), jnp.float32)
    z_enc = jax.random.normal(k_z, (batch, latent_dim), jnp.float32)
    h = jax.random.normal(k_h, (batch, latent_dim), jnp.float32)
    c = jax.random.normal(k_c, (batch, latent_dim), jnp.float32)

    # Same init scheme as torch.nn.LSTMCell: U(-k, k), k = 1/sqrt(H).
    bound = 1.0 / math.sqrt(latent_dim)
    w_ih = jax.random.uniform(k_wih, (4 * latent_dim, 2 * latent_dim),
                              jnp.float32, -bound, bound)   # torch layout (4H, 2H)
    w_hh = jax.random.uniform(k_whh, (4 * latent_dim, latent_dim),
                              jnp.float32, -bound, bound)   # (4H, H)
    b_ih = jax.random.uniform(k_bih, (4 * latent_dim,), jnp.float32, -bound, bound)
    b_hh = jax.random.uniform(k_bhh, (4 * latent_dim,), jnp.float32, -bound, bound)

    w_packed, bias = pack_lstm_params(w_ih, w_hh, b_ih, b_hh)

    h_next, c_next = lstm_state_forward(x_enc, z_enc, h, c, w_packed, bias)
    jax.block_until_ready((h_next, c_next))

    # Tight check vs a reference that mirrors the bf16 matmul operands.
    h_bf, c_bf = _reference(x_enc, z_enc, h, c, w_packed, bias, cast_bf16=True)
    assert jnp.allclose(h_next, h_bf, atol=1e-3, rtol=1e-3)
    assert jnp.allclose(c_next, c_bf, atol=1e-3, rtol=1e-3)

    # Loose check vs the full-f32 torch.nn.LSTMCell semantics.
    h_f32, c_f32 = _reference(x_enc, z_enc, h, c, w_packed, bias, cast_bf16=False)
    assert jnp.allclose(h_next, h_f32, atol=5e-2, rtol=5e-2)
    assert jnp.allclose(c_next, c_f32, atol=5e-2, rtol=5e-2)

    print("KERNEL_OK")
</pallas_src>

<mosaic_0001>
module attributes {stable_mosaic.version = 11 : i64} {
  func.func @_lstm_cell_kernel(%arg0: i32, %arg1: memref<8x96xbf16, #tpu.memory_space<vmem>>, %arg2: memref<8x32xf32, #tpu.memory_space<vmem>>, %arg3: memref<96x128xbf16, #tpu.memory_space<vmem>>, %arg4: memref<1x128xf32, #tpu.memory_space<vmem>>, %arg5: memref<8x64xf32, #tpu.memory_space<vmem>>) attributes {dimension_semantics = [#tpu.dimension_semantics<parallel>], iteration_bounds = array<i64: 1>, scalar_prefetch = 0 : i64, scratch_operands = 0 : i64, tpu.core_type = #tpu.core_type<tc>, window_params = [{transform_indices = @transform_0, window_bounds = array<i64: 8, 96>}, {transform_indices = @transform_1, window_bounds = array<i64: 8, 32>}, {pipeline_mode = #tpu.pipeline_mode<synchronous>, transform_indices = @transform_2, window_bounds = array<i64: 96, 128>}, {pipeline_mode = #tpu.pipeline_mode<synchronous>, transform_indices = @transform_3, window_bounds = array<i64: 1, 128>}, {transform_indices = @transform_4, window_bounds = array<i64: 8, 64>}]} {
    %c0 = arith.constant 0 : index
    %c0_0 = arith.constant 0 : index
    %0 = vector.load %arg1[%c0, %c0_0] : memref<8x96xbf16, #tpu.memory_space<vmem>>, vector<8x96xbf16>
    %c0_1 = arith.constant 0 : index
    %c0_2 = arith.constant 0 : index
    %1 = vector.load %arg3[%c0_1, %c0_2] : memref<96x128xbf16, #tpu.memory_space<vmem>>, vector<96x128xbf16>
    %cst = arith.constant dense<0.000000e+00> : vector<8x128xf32>
    %2 = tpu.matmul %0, %1, %cst {dimension_numbers = #tpu.dot_dimension_numbers<[1], [0], [0], [1], [0, 0, 1, 1], [], []>} : vector<8x96xbf16>, vector<96x128xbf16>, vector<8x128xf32> -> vector<8x128xf32>
    %c0_3 = arith.constant 0 : index
    %c0_4 = arith.constant 0 : index
    %3 = vector.load %arg4[%c0_3, %c0_4] : memref<1x128xf32, #tpu.memory_space<vmem>>, vector<1x128xf32>
    %4 = vector.broadcast %3 : vector<1x128xf32> to vector<8x128xf32>
    %5 = arith.addf %2, %4 : vector<8x128xf32>
    %6 = arith.negf %5 : vector<8x128xf32>
    %7 = math.exp %6 : vector<8x128xf32>
    %cst_5 = arith.constant 1.000000e+00 : f32
    %8 = vector.broadcast %cst_5 : f32 to vector<8x128xf32>
    %9 = arith.addf %8, %7 : vector<8x128xf32>
    %10 = arith.divf %8, %9 : vector<8x128xf32>
    %11 = math.tanh %5 : vector<8x128xf32>
    %12 = tpu.iota {dimensions = array<i32: 1>} : vector<8x128xi32>
    %c64_i32 = arith.constant 64 : i32
    %13 = vector.broadcast %c64_i32 : i32 to vector<8x128xi32>
    %14 = arith.cmpi sge, %12, %13 : vector<8x128xi32>
    %c96_i32 = arith.constant 96 : i32
    %15 = vector.broadcast %c96_i32 : i32 to vector<8x128xi32>
    %16 = arith.cmpi slt, %12, %15 : vector<8x128xi32>
    %17 = arith.andi %14, %16 : vector<8x128xi1>
    %18 = arith.select %17, %11, %10 : vector<8x128xi1>, vector<8x128xf32>
    %19 = vector.extract_strided_slice %18 {offsets = [0, 0], sizes = [8, 32], strides = [1, 1]} : vector<8x128xf32> to vector<8x32xf32>
    %20 = vector.extract_strided_slice %18 {offsets = [0, 32], sizes = [8, 32], strides = [1, 1]} : vector<8x128xf32> to vector<8x32xf32>
    %21 = vector.extract_strided_slice %18 {offsets = [0, 64], sizes = [8, 32], strides = [1, 1]} : vector<8x128xf32> to vector<8x32xf32>
    %22 = vector.extract_strided_slice %18 {offsets = [0, 96], sizes = [8, 32], strides = [1, 1]} : vector<8x128xf32> to vector<8x32xf32>
    %c0_6 = arith.constant 0 : index
    %c0_7 = arith.constant 0 : index
    %23 = vector.load %arg2[%c0_6, %c0_7] : memref<8x32xf32, #tpu.memory_space<vmem>>, vector<8x32xf32>
    %24 = arith.mulf %20, %23 : vector<8x32xf32>
    %25 = arith.mulf %19, %21 : vector<8x32xf32>
    %26 = arith.addf %24, %25 : vector<8x32xf32>
    %27 = math.tanh %26 : vector<8x32xf32>
    %28 = arith.mulf %22, %27 : vector<8x32xf32>
    %c0_8 = arith.constant 0 : index
    %c0_9 = arith.constant 0 : index
    %29 = vector.load %arg5[%c0_8, %c0_9] : memref<8x64xf32, #tpu.memory_space<vmem>>, vector<8x32xf32>
    tpu.vector_store %arg5[%c0_8, %c0_9], %28 {strides = array<i32>} : memref<8x64xf32, #tpu.memory_space<vmem>>, vector<8x32xf32>,
    %c0_10 = arith.constant 0 : index
    %c32 = arith.constant 32 : index
    %30 = vector.load %arg5[%c0_10, %c32] : memref<8x64xf32, #tpu.memory_space<vmem>>, vector<8x32xf32>
    tpu.vector_store %arg5[%c0_10, %c32], %26 {strides = array<i32>} : memref<8x64xf32, #tpu.memory_space<vmem>>, vector<8x32xf32>,
    return
  }
  func.func @transform_0(%arg0: i32) -> (i32, i32) {
    %c0_i32 = arith.constant 0 : i32
    %c0_i32_0 = arith.constant 0 : i32
    return %arg0, %c0_i32 : i32, i32
  }
  func.func @transform_1(%arg0: i32) -> (i32, i32) {
    %c0_i32 = arith.constant 0 : i32
    %c0_i32_0 = arith.constant 0 : i32
    return %arg0, %c0_i32 : i32, i32
  }
  func.func @transform_2(%arg0: i32) -> (i32, i32) {
    %c0_i32 = arith.constant 0 : i32
    %c0_i32_0 = arith.constant 0 : i32
    %c0_i32_1 = arith.constant 0 : i32
    return %c0_i32, %c0_i32_0 : i32, i32
  }
  func.func @transform_3(%arg0: i32) -> (i32, i32) {
    %c0_i32 = arith.constant 0 : i32
    %c0_i32_0 = arith.constant 0 : i32
    %c0_i32_1 = arith.constant 0 : i32
    return %c0_i32, %c0_i32_0 : i32, i32
  }
  func.func @transform_4(%arg0: i32) -> (i32, i32) {
    %c0_i32 = arith.constant 0 : i32
    %c0_i32_0 = arith.constant 0 : i32
    return %arg0, %c0_i32 : i32, i32
  }
}

</mosaic_0001>

<llo_original>
// kernel: tpu_custom_call.1
$region0: #{tpu_custom_call.1}
  #allocation0 [shape = 'u32[]', space=smem, size = 0x4, offset = 0x4, fixed_abs, tag = 'smem constant byte address 0x4 - core index']
  #allocation1 [shape = 'u32[144,128]{1,0:T(1,128)}', space=vmem, size = 0x12000, scoped, tag = 'internal scratch']
  %s0 = inlined_call_operand.hbm [shape: bf16[8,96], index: 0, kind: input, shape index: {}]
  %s1 = inlined_call_operand.hbm [shape: f32[8,32], index: 1, kind: input, shape index: {}]
  %s2 = inlined_call_operand.hbm [shape: bf16[96,128], index: 2, kind: input, shape index: {}]
  %s3 = inlined_call_operand.vmem [shape: f32[1,128], index: 3, kind: input, shape index: {}]
  %s4 = inlined_call_operand.hbm [shape: f32[8,64], index: 4, kind: output, shape index: {}]
  %s5 = sld [smem:[#allocation0]]
  $region38: #{tpu_custom_call.1} parent=0
    _
  %s7 = ssub.s32 1, %s5
  %s8 = scalar_select 0, %s7, %s5
  $region1: #{tpu_custom_call.1} parent=0
    #allocation2 [shape = 'u8[2048]{0}', space=vmem, size = 0x800, scoped, tag = 'input window, operand 0, single buffered']
    #allocation3 [shape = 's32[1]{0}', space=sflag, size = 0x4, scoped, tag = 'scoped memory for tpu_custom_call.1']
    #allocation4 [shape = 's32[1]{0}', space=sflag, size = 0x4, scoped, tag = 'scoped memory for tpu_custom_call.1']
    #allocation5 [shape = 'u8[4096]{0}', space=vmem, size = 0x1000, scoped, tag = 'input window, operand 1, single buffered']
    #allocation6 [shape = 's32[1]{0}', space=sflag, size = 0x4, scoped, tag = 'scoped memory for tpu_custom_call.1']
    #allocation7 [shape = 'u8[24576]{0}', space=vmem, size = 0x6000, scoped, tag = 'input window, operand 2, single buffered']
    #allocation8 [shape = 'u8[4096]{0}', space=vmem, size = 0x1000, scoped, tag = 'output window, operand 0, single buffered']
    %9 = vsyncpa [#allocation3], 0
    %10 = vsyncpa [#allocation6], 0
    %11 = vsyncpa [#allocation4], 0
    // Predicated region
    $region2: #{tpu_custom_call.1} parent=1 // pred_check
      _
    $region3: #{tpu_custom_call.1} parent=1 // pred_check_branch
      %13 = sbr.rel (0) target = $region5
    $region4: #{tpu_custom_call.1} parent=1 // pred_region
      %s15 = ssub.s32 64, 64
      %16 = vsyncadd [#allocation3], %s15
      %s18 = sshll.u32 [#allocation2], 4
      %s19 = int_to_ptr.vmem [resolvable:$true] %s18
      %21 = dma.hbm_to_vmem [thread:$0]  %s0, 64, %s19, [#allocation3]
    $region5: #{tpu_custom_call.1} parent=1 // pred_fallthru
      _
    // Predicated region
    $region6: #{tpu_custom_call.1} parent=1 // pred_check
      _
    $region7: #{tpu_custom_call.1} parent=1 // pred_check_branch
      %23 = sbr.rel (0) target = $region9
    $region8: #{tpu_custom_call.1} parent=1 // pred_region
      %s25 = ssub.s32 128, 128
      %26 = vsyncadd [#allocation6], %s25
      %s28 = sshll.u32 [#allocation5], 4
      %s29 = int_to_ptr.vmem [resolvable:$true] %s28
      %31 = dma.hbm_to_vmem [thread:$0]  %s1, 128, %s29, [#allocation6]
    $region9: #{tpu_custom_call.1} parent=1 // pred_fallthru
      _
    // Predicated region
    $region10: #{tpu_custom_call.1} parent=1 // pred_check
      _
    $region11: #{tpu_custom_call.1} parent=1 // pred_check_branch
      %33 = sbr.rel (0) target = $region13
    $region12: #{tpu_custom_call.1} parent=1 // pred_region
      %s35 = ssub.s32 768, 768
      %36 = vsyncadd [#allocation6], %s35
      %s37 = sshll.u32 [#allocation7], 4
      %s38 = int_to_ptr.vmem [resolvable:$true] %s37
      %43 = dma.hbm_to_vmem [thread:$0]  %s2, 768, %s38, [#allocation6], 64, 64, 4
    $region13: #{tpu_custom_call.1} parent=1 // pred_fallthru
      _
    // Predicated region
    $region14: #{tpu_custom_call.1} parent=1 // pred_check
      _
    $region15: #{tpu_custom_call.1} parent=1 // pred_check_branch
      %45 = sbr.rel (0) target = $region17
    $region16: #{tpu_custom_call.1} parent=1 // pred_region
      _
    $region17: #{tpu_custom_call.1} parent=1 // pred_fallthru
      _
    // Predicated region
    $region18: #{tpu_custom_call.1} parent=1 // pred_check
      _
    $region19: #{tpu_custom_call.1} parent=1 // pred_check_branch
      %47 = sbr.rel (0) target = $region21
    $region20: #{tpu_custom_call.1} parent=1 // pred_region
      %48 = dma.done [#allocation3], 64
    $region21: #{tpu_custom_call.1} parent=1 // pred_fallthru
      _
    // Predicated region
    $region22: #{tpu_custom_call.1} parent=1 // pred_check
      _
    $region23: #{tpu_custom_call.1} parent=1 // pred_check_branch
      %50 = sbr.rel (0) target = $region25
    $region24: #{tpu_custom_call.1} parent=1 // pred_region
      %51 = dma.done [#allocation6], 128
    $region25: #{tpu_custom_call.1} parent=1 // pred_fallthru
      _
    // Predicated region
    $region26: #{tpu_custom_call.1} parent=1 // pred_check
      _
    $region27: #{tpu_custom_call.1} parent=1 // pred_check_branch
      %53 = sbr.rel (0) target = $region29
    $region28: #{tpu_custom_call.1} parent=1 // pred_region
      %54 = dma.done [#allocation6], 768
    $region29: #{tpu_custom_call.1} parent=1 // pred_fallthru
      _
    %v56 = vld [vmem:[#allocation2] sm:$0xf]
    %v57 = vld [vmem:[#allocation7] sm:$0xf]
    %v58 = vld [vmem:[#allocation7 + $0x4] sm:$0xf]
    %v59 = vld [vmem:[#allocation7 + $0x8] sm:$0xf]
    %v60 = vld [vmem:[#allocation7 + $0xc] sm:$0xf]
    %v61 = vld [vmem:[#allocation7 + $0x10] sm:$0xf]
    %v62 = vld [vmem:[#allocation7 + $0x14] sm:$0xf]
    %v63 = vld [vmem:[#allocation7 + $0x18] sm:$0xf]
    %v64 = vld [vmem:[#allocation7 + $0x1c] sm:$0xf]
    %v65 = vld [vmem:[#allocation7 + $0x20] sm:$0xf]
    %v66 = vld [vmem:[#allocation7 + $0x24] sm:$0xf]
    %v67 = vld [vmem:[#allocation7 + $0x28] sm:$0xf]
    %v68 = vld [vmem:[#allocation7 + $0x2c] sm:$0xf]
    %v69 = vld [vmem:[%s3] sm:$0x1]
    %v71 = vlaneseq
    %v72 = vshrl.u32 %v71, 7
    %v73 = vsub.s32 0, %v72
    %v74 = vrot.slane %v69, %v73
    %v88 = vunpack.c.l.b16 %v57
    %v89 = vunpack.c.l.b16 %v58
    %v90 = vunpack.c.l.b16 %v59
    %v91 = vunpack.c.l.b16 %v60
    %v92 = vunpack.c.l.b16 %v61
    %v93 = vunpack.c.l.b16 %v62
    %v94 = vunpack.c.l.b16 %v63
    %v95 = vunpack.c.l.b16 %v64
    %v96 = vunpack.c.l.b16 %v65
    %v97 = vunpack.c.l.b16 %v66
    %v98 = vunpack.c.l.b16 %v67
    %v99 = vunpack.c.l.b16 %v68
    %v100 = vpack.c.b16 %v89, %v88
    %v101 = vpack.c.b16 %v91, %v90
    %v102 = vpack.c.b16 %v93, %v92
    %v103 = vpack.c.b16 %v95, %v94
    %v104 = vpack.c.b16 %v97, %v96
    %v105 = vpack.c.b16 %v99, %v98
    %vm112 = vcmask 785408
    %v114 = vsel %vm112, %v56, 0
    %116 = vmatprep.subr.bf16.mxu0 0
    %117 = vmatpush1.bf16.msra.mxu0 %v100
    %118 = vmatprep.subr.bf16.mxu0 0
    %119 = vmatpush1.bf16.msra.mxu0 %v101
    %120 = vmatprep.subr.bf16.mxu0 0
    %121 = vmatpush1.bf16.msra.mxu0 %v102
    %122 = vmatprep.subr.bf16.mxu0 0
    %123 = vmatpush1.bf16.msra.mxu0 %v103
    %124 = vmatprep.subr.bf16.mxu0 0
    %125 = vmatpush1.bf16.msra.mxu0 %v104
    %126 = vmatprep.subr.bf16.mxu0 0
    %127 = vmatpush1.bf16.msra.mxu0 %v105
    %128 = vmatprep.subr.bf16.mxu0 0
    %129 = vmatpush1.bf16.msra.mxu0 0
    %130 = vmatprep.subr.bf16.mxu0 0
    %131 = vmatpush1.bf16.msra.mxu0 0
    %132 = vmatprep.subr.bf16.mxu0 0
    %133 = vmatpush1.bf16.msra.mxu0 0
    %134 = vmatprep.subr.bf16.mxu0 0
    %135 = vmatpush1.bf16.msra.mxu0 0
    %136 = vmatprep.subr.bf16.mxu0 0
    %137 = vmatpush1.bf16.msra.mxu0 0
    %138 = vmatprep.subr.bf16.mxu0 0
    %139 = vmatpush1.bf16.msra.mxu0 0
    %140 = vmatprep.subr.bf16.mxu0 0
    %141 = vmatpush1.bf16.msra.mxu0 0
    %142 = vmatprep.subr.bf16.mxu0 0
    %143 = vmatpush1.bf16.msra.mxu0 0
    %144 = vmatprep.subr.bf16.mxu0 0
    %145 = vmatpush1.bf16.msra.mxu0 0
    %146 = vmatprep.subr.bf16.mxu0 0
    %147 = vmatpush1.bf16.msra.mxu0 0
    %148 = vmatprep.mubr.bf16.mxu0 0
    %149 = vmatmul.mubr.bf16.gmra.mrb[0].mxu0 %v114
    %v150 = vpop.f32.mrb[0].mxu0
    %v151 = vadd.f32 %v74, %v150
    %v152 = vpop.f32.mrb[0].mxu0
    %v153 = vpop.f32.mrb[0].mxu0
    %v154 = vpop.f32.mrb[0].mxu0
    %155 = vdwg.mxu0
    %v156 = vxor.u32 %v151, 2147483648
    %v157 = vmul.f32 %v156, 1.442695
    %v158 = vpow.pop %v157
    %v159 = vadd.f32 %v158, 1.0
    %v160 = vrcp.pop %v159
    %v161 = vmul.f32 1.0, %v160
    %v162 = vtanh.pop %v151
    %v163 = vlaneseq
    %v164 = vand.u32 %v163, 127
    %vm165 = vcmp.ge.s32.totalorder %v164, 64
    %vm166 = vcmp.lt.s32.totalorder %v164, 96
    %vm167 = vmand %vm165, %vm166
    %v168 = vsel %vm167, %v162, %v161
    %v169 = vld [vmem:[#allocation5] sm:$0xff]
    %171 = vrot.lane.b32.xlu0 %v169, 32
    %v172 = vpop.permute.xlu0 %171
    %v174 = vmul.f32 %v168, %v172
    %176 = vrot.lane.b32.xlu0 %v168, 64
    %v177 = vpop.permute.xlu0 %176
    %v179 = vmul.f32 %v168, %v177
    %181 = vrot.lane.b32.xlu0 %v179, 32
    %v182 = vpop.permute.xlu0 %181
    %v184 = vadd.f32 %v174, %v182
    %v185 = vtanh.pop %v184
    %187 = vrot.lane.b32.xlu0 %v185, 64
    %v188 = vpop.permute.xlu0 %187
    %v190 = vmul.f32 %v168, %v188
    %192 = vrot.lane.b32.xlu0 %v190, 32
    %v193 = vpop.permute.xlu0 %192
    %vm195 = vcmask 261120
    %196 = vst.msk [vmem:[#allocation8] sm:$0xff] %vm195, %v193
    %vm197 = vcmask 523520
    %198 = vst.msk [vmem:[#allocation8] sm:$0xff] %vm197, %v184
    // Predicated region
    $region30: #{tpu_custom_call.1} parent=1 // pred_check
      _
    $region31: #{tpu_custom_call.1} parent=1 // pred_check_branch
      %200 = sbr.rel (0) target = $region33
    $region32: #{tpu_custom_call.1} parent=1 // pred_region
      %s202 = ssub.s32 128, 128
      %203 = vsyncadd [#allocation4], %s202
      %s205 = sshll.u32 [#allocation8], 4
      %s206 = int_to_ptr.vmem [resolvable:$true] %s205
      %208 = dma.vmem_to_hbm [thread:$0]  %s206, 128, %s4, [#allocation4]
    $region33: #{tpu_custom_call.1} parent=1 // pred_fallthru
      _
    // Predicated region
    $region34: #{tpu_custom_call.1} parent=1 // pred_check
      _
    $region35: #{tpu_custom_call.1} parent=1 // pred_check_branch
      %210 = sbr.rel (0) target = $region37
    $region36: #{tpu_custom_call.1} parent=1 // pred_region
      %211 = dma.done [#allocation4], 128
    $region37: #{tpu_custom_call.1} parent=1 // pred_fallthru
      _
    %212 = vsyncpa [#allocation3], 1
    %213 = vsyncpa [#allocation6], 1
    %214 = vsyncpa [#allocation4], 1

</llo_original>
